<compile_context>
chip_gen: v5e
topology: v5e:2x2
jax: 0.10.0
libtpu: 0.0.40
codegen_flags: <defaults>
</compile_context>

<pallas_src>
import functools
import math

import jax
import jax.numpy as jnp
from jax import lax
from jax.experimental import pallas as pl
from jax.experimental.pallas import tpu as pltpu


def _qtsi_kernel(ts_ref, qstack_ref, mask_ref,
                 w_k_ref, b_k_ref, w_v_ref, b_v_ref, w_og_ref, b_og_ref,
                 out_ref, k_scr, v_scr, acc_scr, *,
                 num_heads, num_queries, seq_per_batch, batch_block):
    S = seq_per_batch
    Nq = num_queries

    ts = ts_ref[...]                                            # [bb*S, d_model] bf16

    # Fused (encoder o K) and (encoder o V) projections.  Two separate matmuls
    # so K and V never need to be split on a non-128-aligned lane boundary.
    k = jnp.dot(ts, w_k_ref[...], preferred_element_type=jnp.float32) + b_k_ref[...]
    v = jnp.dot(ts, w_v_ref[...], preferred_element_type=jnp.float32) + b_v_ref[...]
    k_scr[...] = k.astype(k_scr.dtype)                          # [bb*S, E] bf16
    v_scr[...] = v.astype(v_scr.dtype)

    qstack = qstack_ref[...]        # [H*Nq, E] bf16, pre-scaled + head-masked
    mask = mask_ref[...]            # [H*Nq, E] f32 head-ownership mask

    # One batch element per iteration (real loop, not a static unroll) so only
    # a single kb/vb/scores working set is live at a time.
    @pl.loop(0, batch_block)
    def _(b):
        r0 = pl.multiple_of(b * S, S)
        kb = k_scr[pl.ds(r0, S), :]                             # [S, E] bf16
        vb = v_scr[pl.ds(r0, S), :]

        # All heads' scores in one matmul: row (h*Nq+q) of qstack only has head
        # h's lanes non-zero.  dot_general contracts kb on its LAST dim, so no
        # explicit transpose of kb is materialized.
        s = lax.dot_general(qstack, kb,
                            dimension_numbers=(((1,), (1,)), ((), ())),
                            preferred_element_type=jnp.float32)  # [H*Nq, S]
        s = s - jnp.max(s, axis=-1, keepdims=True)
        p = jnp.exp(s)
        p = p * pl.reciprocal(jnp.sum(p, axis=-1, keepdims=True), approx=True)

        m = jnp.dot(p.astype(vb.dtype), vb,
                    preferred_element_type=jnp.float32)          # [H*Nq, E]
        m = m * mask            # keep only the lanes owned by each row's head
        acc = m[0:Nq, :]
        for h in range(1, num_heads):                            # aligned sublane-block adds
            acc = acc + m[h * Nq:(h + 1) * Nq, :]

        q0 = pl.multiple_of(b * Nq, Nq)
        acc_scr[pl.ds(q0, Nq), :] = acc

    # Fused MHA out-projection + text_vector_generator.  The last dim is padded
    # to a 128-lane multiple so this store is lane-dense (no masked stores).
    text = jnp.dot(acc_scr[...].astype(w_og_ref.dtype), w_og_ref[...],
                   preferred_element_type=jnp.float32) + b_og_ref[...]
    out_ref[...] = text.astype(out_ref.dtype)


def _pick_batch_block(B, S, d_model, E, Nq, hidden_pad, budget_bytes=8 << 20):
    """Largest divisor of B that fits a per-step VMEM budget and keeps a
    >=2-step (preferably even) parallel grid for v7x megacore + DMA overlap."""
    per_b = (2 * S * d_model * 2          # streamed ts tile (bf16, double buffered)
             + 2 * Nq * hidden_pad * 4    # padded output tile (f32, double buffered)
             + 2 * S * E * 2              # k/v scratch (bf16)
             + 5 * Nq * E * 4)            # acc scratch + live intermediates (rough)
    cap = max(1, int(budget_bytes // max(per_b, 1)))
    divisors = [d for d in range(1, B + 1) if B % d == 0 and d <= cap]
    even = [d for d in divisors if (B // d) >= 2 and (B // d) % 2 == 0]
    twoplus = [d for d in divisors if (B // d) >= 2]
    if even:
        return max(even)
    if twoplus:
        return max(twoplus)
    return max(divisors) if divisors else 1


def _vmem_limit_bytes(bb, S, d_model, E, Nq, H, hidden_pad):
    bf2, f4 = 2, 4
    est = 0
    est += 2 * bb * S * d_model * bf2                 # ts tile (double buffered)
    est += 2 * bb * Nq * hidden_pad * f4              # output tile (double buffered)
    est += 2 * 2 * H * Nq * E * f4                    # qstack + mask
    est += 2 * (2 * d_model * E * bf2 + 2 * E * f4)   # fused K/V weights + biases
    est += 2 * (E * hidden_pad * bf2 + hidden_pad * f4)
    est += 2 * bb * S * E * bf2 + bb * Nq * E * f4    # scratch
    est += 8 * H * Nq * max(S, E) * f4                # in-flight intermediates (rough)
    return int(min(100 * 1024 * 1024, max(32 * 1024 * 1024, 2 * est)))


def query_time_series_interaction(x_enc, patch_embedding, params, *, num_heads,
                                  batch_block=None):
    """Pallas implementation of QueryTimeSeriesInteraction.forward."""
    B, L, D = x_enc.shape                  # x_enc only contributes shapes (as in PyTorch)
    BD, P, d_model = patch_embedding.shape
    assert BD == B * D
    S = D * P                              # keys/values per batch element

    q_emb = params["query_embeddings"]     # [Nq, E]
    Nq, E = q_emb.shape
    hidden = params["b_gen"].shape[-1]
    hd = E // num_heads
    assert hd * num_heads == E
    # TODO(synk): for E > 128 the head-masked stacked-Q trick does H-times
    # redundant MXU work; switch to a per-head batched dot_general there.
    assert E <= 128, "stacked-Q head-masking path assumes E <= 128"

    hidden_pad = ((hidden + 127) // 128) * 128

    bb = _pick_batch_block(B, S, d_model, E, Nq, hidden_pad) \
        if batch_block is None else batch_block
    assert B % bb == 0
    grid = (B // bb,)

    f32, bf16 = jnp.float32, jnp.bfloat16

    # Same memory-order flatten as the two .view() calls in PyTorch; streamed
    # in bf16 (halves the dominant HBM->VMEM DMA bytes).
    ts2d = patch_embedding.reshape(B * S, d_model).astype(bf16)

    # ---- one-time parameter fusion (in f32, cast to bf16 ONCE) ----
    q_proj = (q_emb.astype(f32) @ params["w_q"].astype(f32)
              + params["b_q"].astype(f32)) * (1.0 / math.sqrt(hd))          # [Nq, E]
    head_of_lane = jnp.arange(E, dtype=jnp.int32) // hd
    head_mask = (head_of_lane[None, :] ==
                 jnp.arange(num_heads, dtype=jnp.int32)[:, None]).astype(f32)  # [H, E]
    mask_full = jnp.repeat(head_mask, Nq, axis=0)                           # [H*Nq, E]
    qstack = (jnp.tile(q_proj, (num_heads, 1)) * mask_full).astype(bf16)    # [H*Nq, E]

    w_k_f = (params["w_enc"].astype(f32) @ params["w_k"].astype(f32)).astype(bf16)
    b_k_f = (params["b_enc"].astype(f32) @ params["w_k"].astype(f32)
             + params["b_k"].astype(f32))                                   # [1, E] f32
    w_v_f = (params["w_enc"].astype(f32) @ params["w_v"].astype(f32)).astype(bf16)
    b_v_f = (params["b_enc"].astype(f32) @ params["w_v"].astype(f32)
             + params["b_v"].astype(f32))

    w_og = params["w_out"].astype(f32) @ params["w_gen"].astype(f32)        # [E, hidden]
    b_og = (params["b_out"].astype(f32) @ params["w_gen"].astype(f32)
            + params["b_gen"].astype(f32))                                  # [1, hidden]
    # Zero-pad the fused output projection so the kernel's final store is a
    # full-128-lane write; the padding is sliced off after the pallas_call.
    w_og = jnp.pad(w_og, ((0, 0), (0, hidden_pad - hidden))).astype(bf16)
    b_og = jnp.pad(b_og, ((0, 0), (0, hidden_pad - hidden)))

    kernel = functools.partial(_qtsi_kernel, num_heads=num_heads, num_queries=Nq,
                               seq_per_batch=S, batch_block=bb)

    full2d = lambda shape: pl.BlockSpec(shape, lambda i: (0, 0))
    vmem_limit = _vmem_limit_bytes(bb, S, d_model, E, Nq, num_heads, hidden_pad)

    out = pl.pallas_call(
        kernel,
        out_shape=jax.ShapeDtypeStruct((B * Nq, hidden_pad), jnp.float32),
        grid_spec=pltpu.PrefetchScalarGridSpec(
            num_scalar_prefetch=0,
            grid=grid,
            in_specs=[
                pl.BlockSpec((bb * S, d_model), lambda i: (i, 0)),   # streamed ts rows
                full2d((num_heads * Nq, E)),                         # stacked masked Q (bf16)
                full2d((num_heads * Nq, E)),                         # head mask (f32)
                full2d((d_model, E)), full2d((1, E)),                # fused enc + K
                full2d((d_model, E)), full2d((1, E)),                # fused enc + V
                full2d((E, hidden_pad)), full2d((1, hidden_pad)),    # fused out + gen (padded)
            ],
            out_specs=pl.BlockSpec((bb * Nq, hidden_pad), lambda i: (i, 0)),
            scratch_shapes=[
                pltpu.VMEM((bb * S, E), bf16),        # K scratch
                pltpu.VMEM((bb * S, E), bf16),        # V scratch
                pltpu.VMEM((bb * Nq, E), f32),        # attention accumulator
            ]),
        compiler_params=pltpu.CompilerParams(
            dimension_semantics=("parallel",),
            vmem_limit_bytes=vmem_limit),
    )(ts2d, qstack, mask_full, w_k_f, b_k_f, w_v_f, b_v_f, w_og, b_og)

    return out[:, :hidden].reshape(B, Nq, hidden)


def _reference(x_enc, patch_embedding, params, *, num_heads):
    """Pure-JAX f32 reference mirroring the PyTorch forward (unfused)."""
    B, L, D = x_enc.shape
    d_model = patch_embedding.shape[-1]
    ts = patch_embedding.reshape(B, -1, d_model)
    enc = ts @ params["w_enc"] + params["b_enc"]
    q = jnp.broadcast_to(params["query_embeddings"][None],
                         (B,) + params["query_embeddings"].shape)
    Q = q @ params["w_q"] + params["b_q"]
    K = enc @ params["w_k"] + params["b_k"]
    V = enc @ params["w_v"] + params["b_v"]
    E = Q.shape[-1]
    hd = E // num_heads
    Qh = Q.reshape(B, -1, num_heads, hd).transpose(0, 2, 1, 3)
    Kh = K.reshape(B, -1, num_heads, hd).transpose(0, 2, 1, 3)
    Vh = V.reshape(B, -1, num_heads, hd).transpose(0, 2, 1, 3)
    s = jnp.einsum("bhqd,bhkd->bhqk", Qh, Kh) / math.sqrt(hd)
    p = jax.nn.softmax(s, axis=-1)
    o = jnp.einsum("bhqk,bhkd->bhqd", p, Vh).transpose(0, 2, 1, 3).reshape(B, -1, E)
    o = o @ params["w_out"] + params["b_out"]
    return o @ params["w_gen"] + params["b_gen"]


if __name__ == "__main__":
    # module hyper-parameters
    num_queries = 8
    time_series_embedding_dim = 16   # d_model
    query_embedding_dim = 32         # E
    hidden_dim = 32
    num_heads = 4

    # data shapes
    B, L, D = 2, 8, 4                # x_enc: [B, L, n_vars]
    P = 4                            # num_patches
    key = jax.random.PRNGKey(0)
    ks = jax.random.split(key, 16)

    x_enc = jax.random.normal(ks[0], (B, L, D), jnp.float32)
    patch_embedding = jax.random.normal(
        ks[1], (B * D, P, time_series_embedding_dim), jnp.float32)

    E = query_embedding_dim
    dm = time_series_embedding_dim
    params = {
        "query_embeddings": jax.random.normal(ks[2], (num_queries, E), jnp.float32),
        "w_enc": jax.random.normal(ks[3], (dm, E), jnp.float32) * 0.1,
        "b_enc": jax.random.normal(ks[4], (1, E), jnp.float32) * 0.1,
        "w_q": jax.random.normal(ks[5], (E, E), jnp.float32) * 0.1,
        "b_q": jax.random.normal(ks[6], (1, E), jnp.float32) * 0.1,
        "w_k": jax.random.normal(ks[7], (E, E), jnp.float32) * 0.1,
        "b_k": jax.random.normal(ks[8], (1, E), jnp.float32) * 0.1,
        "w_v": jax.random.normal(ks[9], (E, E), jnp.float32) * 0.1,
        "b_v": jax.random.normal(ks[10], (1, E), jnp.float32) * 0.1,
        "w_out": jax.random.normal(ks[11], (E, E), jnp.float32) * 0.1,
        "b_out": jax.random.normal(ks[12], (1, E), jnp.float32) * 0.1,
        "w_gen": jax.random.normal(ks[13], (E, hidden_dim), jnp.float32) * 0.1,
        "b_gen": jax.random.normal(ks[14], (1, hidden_dim), jnp.float32) * 0.1,
    }

    out = query_time_series_interaction(x_enc, patch_embedding, params,
                                        num_heads=num_heads)
    out = jax.block_until_ready(out)

    ref = _reference(x_enc, patch_embedding, params, num_heads=num_heads)
    assert out.shape == (B, num_queries, hidden_dim)
    # Tolerance covers bf16 activations/weights (f32 accumulation) and the EUP
    # approximate reciprocal in the softmax.
    assert jnp.allclose(out, ref, rtol=3e-2, atol=3e-2), "mismatch vs reference"

    print("KERNEL_OK")
</pallas_src>

<mosaic_0001>
module attributes {stable_mosaic.version = 11 : i64} {
  func.func @_qtsi_kernel(%arg0: i32, %arg1: memref<16x16xbf16, #tpu.memory_space<vmem>>, %arg2: memref<32x32xbf16, #tpu.memory_space<vmem>>, %arg3: memref<32x32xf32, #tpu.memory_space<vmem>>, %arg4: memref<16x32xbf16, #tpu.memory_space<vmem>>, %arg5: memref<1x32xf32, #tpu.memory_space<vmem>>, %arg6: memref<16x32xbf16, #tpu.memory_space<vmem>>, %arg7: memref<1x32xf32, #tpu.memory_space<vmem>>, %arg8: memref<32x128xbf16, #tpu.memory_space<vmem>>, %arg9: memref<1x128xf32, #tpu.memory_space<vmem>>, %arg10: memref<8x128xf32, #tpu.memory_space<vmem>>, %arg11: memref<16x32xbf16, #tpu.memory_space<vmem>>, %arg12: memref<16x32xbf16, #tpu.memory_space<vmem>>, %arg13: memref<8x32xf32, #tpu.memory_space<vmem>>) attributes {dimension_semantics = [#tpu.dimension_semantics<parallel>], iteration_bounds = array<i64: 2>, scalar_prefetch = 0 : i64, scratch_operands = 3 : i64, tpu.core_type = #tpu.core_type<tc>, window_params = [{transform_indices = @transform_0, window_bounds = array<i64: 16, 16>}, {pipeline_mode = #tpu.pipeline_mode<synchronous>, transform_indices = @transform_1, window_bounds = array<i64: 32, 32>}, {pipeline_mode = #tpu.pipeline_mode<synchronous>, transform_indices = @transform_2, window_bounds = array<i64: 32, 32>}, {pipeline_mode = #tpu.pipeline_mode<synchronous>, transform_indices = @transform_3, window_bounds = array<i64: 16, 32>}, {pipeline_mode = #tpu.pipeline_mode<synchronous>, transform_indices = @transform_4, window_bounds = array<i64: 1, 32>}, {pipeline_mode = #tpu.pipeline_mode<synchronous>, transform_indices = @transform_5, window_bounds = array<i64: 16, 32>}, {pipeline_mode = #tpu.pipeline_mode<synchronous>, transform_indices = @transform_6, window_bounds = array<i64: 1, 32>}, {pipeline_mode = #tpu.pipeline_mode<synchronous>, transform_indices = @transform_7, window_bounds = array<i64: 32, 128>}, {pipeline_mode = #tpu.pipeline_mode<synchronous>, transform_indices = @transform_8, window_bounds = array<i64: 1, 128>}, {transform_indices = @transform_9, window_bounds = array<i64: 8, 128>}]} {
    %c0 = arith.constant 0 : index
    %c0_0 = arith.constant 0 : index
    %0 = vector.load %arg1[%c0, %c0_0] : memref<16x16xbf16, #tpu.memory_space<vmem>>, vector<16x16xbf16>
    %c0_1 = arith.constant 0 : index
    %c0_2 = arith.constant 0 : index
    %1 = vector.load %arg4[%c0_1, %c0_2] : memref<16x32xbf16, #tpu.memory_space<vmem>>, vector<16x32xbf16>
    %cst = arith.constant dense<0.000000e+00> : vector<16x32xf32>
    %2 = tpu.matmul %0, %1, %cst {dimension_numbers = #tpu.dot_dimension_numbers<[1], [0], [0], [1], [0, 0, 1, 1], [], []>} : vector<16x16xbf16>, vector<16x32xbf16>, vector<16x32xf32> -> vector<16x32xf32>
    %c0_3 = arith.constant 0 : index
    %c0_4 = arith.constant 0 : index
    %3 = vector.load %arg5[%c0_3, %c0_4] : memref<1x32xf32, #tpu.memory_space<vmem>>, vector<1x32xf32>
    %4 = vector.broadcast %3 : vector<1x32xf32> to vector<16x32xf32>
    %5 = arith.addf %2, %4 : vector<16x32xf32>
    %c0_5 = arith.constant 0 : index
    %c0_6 = arith.constant 0 : index
    %6 = vector.load %arg6[%c0_5, %c0_6] : memref<16x32xbf16, #tpu.memory_space<vmem>>, vector<16x32xbf16>
    %cst_7 = arith.constant dense<0.000000e+00> : vector<16x32xf32>
    %7 = tpu.matmul %0, %6, %cst_7 {dimension_numbers = #tpu.dot_dimension_numbers<[1], [0], [0], [1], [0, 0, 1, 1], [], []>} : vector<16x16xbf16>, vector<16x32xbf16>, vector<16x32xf32> -> vector<16x32xf32>
    %c0_8 = arith.constant 0 : index
    %c0_9 = arith.constant 0 : index
    %8 = vector.load %arg7[%c0_8, %c0_9] : memref<1x32xf32, #tpu.memory_space<vmem>>, vector<1x32xf32>
    %9 = vector.broadcast %8 : vector<1x32xf32> to vector<16x32xf32>
    %10 = arith.addf %7, %9 : vector<16x32xf32>
    %11 = arith.truncf %5 : vector<16x32xf32> to vector<16x32xbf16>
    %c0_10 = arith.constant 0 : index
    %c0_11 = arith.constant 0 : index
    %12 = vector.load %arg11[%c0_10, %c0_11] : memref<16x32xbf16, #tpu.memory_space<vmem>>, vector<16x32xbf16>
    tpu.vector_store %arg11[%c0_10, %c0_11], %11 {strides = array<i32>} : memref<16x32xbf16, #tpu.memory_space<vmem>>, vector<16x32xbf16>,
    %13 = arith.truncf %10 : vector<16x32xf32> to vector<16x32xbf16>
    %c0_12 = arith.constant 0 : index
    %c0_13 = arith.constant 0 : index
    %14 = vector.load %arg12[%c0_12, %c0_13] : memref<16x32xbf16, #tpu.memory_space<vmem>>, vector<16x32xbf16>
    tpu.vector_store %arg12[%c0_12, %c0_13], %13 {strides = array<i32>} : memref<16x32xbf16, #tpu.memory_space<vmem>>, vector<16x32xbf16>,
    %c0_14 = arith.constant 0 : index
    %c0_15 = arith.constant 0 : index
    %15 = vector.load %arg2[%c0_14, %c0_15] : memref<32x32xbf16, #tpu.memory_space<vmem>>, vector<32x32xbf16>
    %c0_16 = arith.constant 0 : index
    %c0_17 = arith.constant 0 : index
    %16 = vector.load %arg3[%c0_16, %c0_17] : memref<32x32xf32, #tpu.memory_space<vmem>>, vector<32x32xf32>
    %c0_i32 = arith.constant 0 : i32
    %c1_i32 = arith.constant 1 : i32
    %17 = arith.muli %c0_i32, %c1_i32 : i32
    %c0_i32_18 = arith.constant 0 : i32
    %18 = arith.addi %c0_i32_18, %17 : i32
    %c16_i32 = arith.constant 16 : i32
    %19 = arith.muli %18, %c16_i32 : i32
    %20 = tpu.assume_multiple %19, 16 : i32
    %21 = arith.index_cast %20 : i32 to index
    %c0_19 = arith.constant 0 : index
    %22 = vector.load %arg11[%21, %c0_19] : memref<16x32xbf16, #tpu.memory_space<vmem>>, vector<16x32xbf16>
    %23 = arith.index_cast %20 : i32 to index
    %c0_20 = arith.constant 0 : index
    %24 = vector.load %arg12[%23, %c0_20] : memref<16x32xbf16, #tpu.memory_space<vmem>>, vector<16x32xbf16>
    %cst_21 = arith.constant dense<0.000000e+00> : vector<32x16xf32>
    %25 = tpu.matmul %15, %22, %cst_21 {dimension_numbers = #tpu.dot_dimension_numbers<[1], [1], [0], [0], [0, 0, 1, 0], [], []>} : vector<32x32xbf16>, vector<16x32xbf16>, vector<32x16xf32> -> vector<32x16xf32>
    %cst_22 = arith.constant dense<0xFF800000> : vector<32xf32>
    %26 = vector.multi_reduction <maximumf>, %25, %cst_22 [1] : vector<32x16xf32> to vector<32xf32>
    %27 = vector.shape_cast %26 : vector<32xf32> to vector<32x1xf32>
    %28 = vector.broadcast %27 : vector<32x1xf32> to vector<32x16xf32>
    %29 = arith.subf %25, %28 : vector<32x16xf32>
    %30 = math.exp %29 : vector<32x16xf32>
    %cst_23 = arith.constant dense<0.000000e+00> : vector<32xf32>
    %31 = vector.multi_reduction <add>, %30, %cst_23 [1] : vector<32x16xf32> to vector<32xf32>
    %32 = vector.shape_cast %31 : vector<32xf32> to vector<32x1xf32>
    %33 = tpu.reciprocal %32 {approx = true} : vector<32x1xf32> -> vector<32x1xf32>
    %34 = vector.broadcast %33 : vector<32x1xf32> to vector<32x16xf32>
    %35 = arith.mulf %30, %34 : vector<32x16xf32>
    %36 = arith.truncf %35 : vector<32x16xf32> to vector<32x16xbf16>
    %cst_24 = arith.constant dense<0.000000e+00> : vector<32x32xf32>
    %37 = tpu.matmul %36, %24, %cst_24 {dimension_numbers = #tpu.dot_dimension_numbers<[1], [0], [0], [1], [0, 0, 1, 1], [], []>} : vector<32x16xbf16>, vector<16x32xbf16>, vector<32x32xf32> -> vector<32x32xf32>
    %38 = arith.mulf %37, %16 : vector<32x32xf32>
    %39 = vector.extract_strided_slice %38 {offsets = [0, 0], sizes = [8, 32], strides = [1, 1]} : vector<32x32xf32> to vector<8x32xf32>
    %40 = vector.extract_strided_slice %38 {offsets = [8, 0], sizes = [8, 32], strides = [1, 1]} : vector<32x32xf32> to vector<8x32xf32>
    %41 = arith.addf %39, %40 : vector<8x32xf32>
    %42 = vector.extract_strided_slice %38 {offsets = [16, 0], sizes = [8, 32], strides = [1, 1]} : vector<32x32xf32> to vector<8x32xf32>
    %43 = arith.addf %41, %42 : vector<8x32xf32>
    %44 = vector.extract_strided_slice %38 {offsets = [24, 0], sizes = [8, 32], strides = [1, 1]} : vector<32x32xf32> to vector<8x32xf32>
    %45 = arith.addf %43, %44 : vector<8x32xf32>
    %c8_i32 = arith.constant 8 : i32
    %46 = arith.muli %18, %c8_i32 : i32
    %47 = tpu.assume_multiple %46, 8 : i32
    %48 = arith.index_cast %47 : i32 to index
    %c0_25 = arith.constant 0 : index
    %49 = vector.load %arg13[%48, %c0_25] : memref<8x32xf32, #tpu.memory_space<vmem>>, vector<8x32xf32>
    tpu.vector_store %arg13[%48, %c0_25], %45 {strides = array<i32>} : memref<8x32xf32, #tpu.memory_space<vmem>>, vector<8x32xf32>,
    %c1_i32_26 = arith.constant 1 : i32
    %c0_27 = arith.constant 0 : index
    %c0_28 = arith.constant 0 : index
    %50 = vector.load %arg13[%c0_27, %c0_28] : memref<8x32xf32, #tpu.memory_space<vmem>>, vector<8x32xf32>
    %51 = arith.truncf %50 : vector<8x32xf32> to vector<8x32xbf16>
    %c0_29 = arith.constant 0 : index
    %c0_30 = arith.constant 0 : index
    %52 = vector.load %arg8[%c0_29, %c0_30] : memref<32x128xbf16, #tpu.memory_space<vmem>>, vector<32x128xbf16>
    %cst_31 = arith.constant dense<0.000000e+00> : vector<8x128xf32>
    %53 = tpu.matmul %51, %52, %cst_31 {dimension_numbers = #tpu.dot_dimension_numbers<[1], [0], [0], [1], [0, 0, 1, 1], [], []>} : vector<8x32xbf16>, vector<32x128xbf16>, vector<8x128xf32> -> vector<8x128xf32>
    %c0_32 = arith.constant 0 : index
    %c0_33 = arith.constant 0 : index
    %54 = vector.load %arg9[%c0_32, %c0_33] : memref<1x128xf32, #tpu.memory_space<vmem>>, vector<1x128xf32>
    %55 = vector.broadcast %54 : vector<1x128xf32> to vector<8x128xf32>
    %56 = arith.addf %53, %55 : vector<8x128xf32>
    %c0_34 = arith.constant 0 : index
    %c0_35 = arith.constant 0 : index
    %57 = vector.load %arg10[%c0_34, %c0_35] : memref<8x128xf32, #tpu.memory_space<vmem>>, vector<8x128xf32>
    tpu.vector_store %arg10[%c0_34, %c0_35], %56 {strides = array<i32>} : memref<8x128xf32, #tpu.memory_space<vmem>>, vector<8x128xf32>,
    return
  }
  func.func @transform_0(%arg0: i32) -> (i32, i32) {
    %c0_i32 = arith.constant 0 : i32
    %c0_i32_0 = arith.constant 0 : i32
    return %arg0, %c0_i32 : i32, i32
  }
  func.func @transform_1(%arg0: i32) -> (i32, i32) {
    %c0_i32 = arith.constant 0 : i32
    %c0_i32_0 = arith.constant 0 : i32
    %c0_i32_1 = arith.constant 0 : i32
    return %c0_i32, %c0_i32_0 : i32, i32
  }
  func.func @transform_2(%arg0: i32) -> (i32, i32) {
    %c0_i32 = arith.constant 0 : i32
    %c0_i32_0 = arith.constant 0 : i32
    %c0_i32_1 = arith.constant 0 : i32
    return %c0_i32, %c0_i32_0 : i32, i32
  }
  func.func @transform_3(%arg0: i32) -> (i32, i32) {
    %c0_i32 = arith.constant 0 : i32
    %c0_i32_0 = arith.constant 0 : i32
    %c0_i32_1 = arith.constant 0 : i32
    return %c0_i32, %c0_i32_0 : i32, i32
  }
  func.func @transform_4(%arg0: i32) -> (i32, i32) {
    %c0_i32 = arith.constant 0 : i32
    %c0_i32_0 = arith.constant 0 : i32
    %c0_i32_1 = arith.constant 0 : i32
    return %c0_i32, %c0_i32_0 : i32, i32
  }
  func.func @transform_5(%arg0: i32) -> (i32, i32) {
    %c0_i32 = arith.constant 0 : i32
    %c0_i32_0 = arith.constant 0 : i32
    %c0_i32_1 = arith.constant 0 : i32
    return %c0_i32, %c0_i32_0 : i32, i32
  }
  func.func @transform_6(%arg0: i32) -> (i32, i32) {
    %c0_i32 = arith.constant 0 : i32
    %c0_i32_0 = arith.constant 0 : i32
    %c0_i32_1 = arith.constant 0 : i32
    return %c0_i32, %c0_i32_0 : i32, i32
  }
  func.func @transform_7(%arg0: i32) -> (i32, i32) {
    %c0_i32 = arith.constant 0 : i32
    %c0_i32_0 = arith.constant 0 : i32
    %c0_i32_1 = arith.constant 0 : i32
    return %c0_i32, %c0_i32_0 : i32, i32
  }
  func.func @transform_8(%arg0: i32) -> (i32, i32) {
    %c0_i32 = arith.constant 0 : i32
    %c0_i32_0 = arith.constant 0 : i32
    %c0_i32_1 = arith.constant 0 : i32
    return %c0_i32, %c0_i32_0 : i32, i32
  }
  func.func @transform_9(%arg0: i32) -> (i32, i32) {
    %c0_i32 = arith.constant 0 : i32
    %c0_i32_0 = arith.constant 0 : i32
    return %arg0, %c0_i32 : i32, i32
  }
}

</mosaic_0001>

<llo_original>
// kernel: tpu_custom_call.1
$region0: #{tpu_custom_call.1}
  #allocation0 [shape = 'u32[]', space=smem, size = 0x4, offset = 0x4, fixed_abs, tag = 'smem constant byte address 0x4 - core index']
  #allocation1 [shape = 'u32[72,128]{1,0:T(1,128)}', space=vmem, size = 0x9000, scoped, tag = 'internal scratch']
  #allocation2 [shape = 'bf16[16,32]{1,0:T(8,128)(2,1)}', space=vmem, size = 0x1000, scoped, tag = 'scratch operand']
  #allocation3 [shape = 'bf16[16,32]{1,0:T(8,128)(2,1)}', space=vmem, size = 0x1000, scoped, tag = 'scratch operand']
  #allocation4 [shape = 'f32[8,32]{1,0:T(8,128)}', space=vmem, size = 0x1000, scoped, tag = 'scratch operand']
  %s0 = inlined_call_operand.vmem [shape: bf16[32,16], index: 0, kind: input, shape index: {}]
  %s1 = inlined_call_operand.vmem [shape: bf16[32,32], index: 1, kind: input, shape index: {}]
  %s2 = inlined_call_operand.hbm [shape: f32[32,32], index: 2, kind: input, shape index: {}]
  %s3 = inlined_call_operand.vmem [shape: bf16[16,32], index: 3, kind: input, shape index: {}]
  %s4 = inlined_call_operand.vmem [shape: f32[1,32], index: 4, kind: input, shape index: {}]
  %s5 = inlined_call_operand.hbm [shape: bf16[16,32], index: 5, kind: input, shape index: {}]
  %s6 = inlined_call_operand.vmem [shape: f32[1,32], index: 6, kind: input, shape index: {}]
  %s7 = inlined_call_operand.hbm [shape: bf16[32,128], index: 7, kind: input, shape index: {}]
  %s8 = inlined_call_operand.vmem [shape: f32[1,128], index: 8, kind: input, shape index: {}]
  %s9 = inlined_call_operand.hbm [shape: f32[16,128], index: 9, kind: output, shape index: {}]
  %s10 = sld [smem:[#allocation0]]
  $region81: #{tpu_custom_call.1} parent=0
    _
  %s12 = ssub.s32 1, %s10
  %s13 = scalar_select 0, %s12, %s10
  $region1: #{tpu_custom_call.1} parent=0
    #allocation5 [shape = 'u8[16384]{0}', space=vmem, size = 0x4000, scoped, tag = 'input window, operand 2, single buffered']
    #allocation6 [shape = 's32[2]{0}', space=sflag, size = 0x8, scoped, tag = 'scoped memory for tpu_custom_call.1']
    #allocation7 [shape = 's32[2]{0}', space=sflag, size = 0x8, scoped, tag = 'scoped memory for tpu_custom_call.1']
    #allocation8 [shape = 'u8[4096]{0}', space=vmem, size = 0x1000, scoped, tag = 'input window, operand 5, single buffered']
    #allocation9 [shape = 's32[1]{0}', space=sflag, size = 0x4, scoped, tag = 'scoped memory for tpu_custom_call.1']
    #allocation10 [shape = 'u8[8192]{0}', space=vmem, size = 0x2000, scoped, tag = 'input window, operand 7, single buffered']
    #allocation11 [shape = 'u8[8192]{0}', space=vmem, size = 0x2000, scoped, tag = 'output window, operand 0']
    %14 = vsyncpa [#allocation6], 0
    %15 = vsyncpa [#allocation9], 0
    %16 = vsyncpa [#allocation7], 0
    %s17 = scalar_lea.sflag [#allocation7], 1
    %18 = vsyncpa %s17, 0
    loop: start=0, step=1, limit=4
    $region2: #{tpu_custom_call.1} parent=1 // loop_pre_header
      _
    $region3: #{tpu_custom_call.1} parent=1 // loop_header
      %s20 = sphi 0, %s24
      %p21 = scmp.ge.s32.totalorder %s20, 4
      %s30 = sphi 0, %s32
      %s33 = sphi 0, %s30
      %s34 = sphi 0, %s33
      %s50 = sphi 0, %s34
      %s54 = sphi 0, %s54
      %s56 = sphi 0, %s54
      %s57 = sphi 0, %s56
      %s71 = sphi 0, %s57
      %s75 = sphi 0, %s75
      %s77 = sphi 0, %s75
      %s78 = sphi 0, %s77
      %s92 = sphi 0, %s78
      %s96 = sphi 0, %s96
      %s98 = sphi 0, %s96
      %s99 = sphi 0, %s98
      %s113 = sphi 0, %s99
      %s117 = sphi 0, %s117
      %s119 = sphi 0, %s117
      %s120 = sphi 0, %s119
      %s134 = sphi 0, %s120
      %s138 = sphi 0, %s138
      %s140 = sphi 0, %s138
      %s141 = sphi 0, %s140
      %s155 = sphi 0, %s141
      %s159 = sphi 0, %s159
      %s161 = sphi 0, %s159
      %s162 = sphi 0, %s161
      %s176 = sphi 0, %s162
      %s180 = sphi 0, %s180
      %s182 = sphi 0, %s180
      %s183 = sphi 0, %s182
      %s197 = sphi 0, %s183
      %s201 = sphi 0, %s201
      %s203 = sphi 0, %s201
      %s204 = sphi 0, %s203
      %s218 = sphi 0, %s204
      %s224 = sphi 0, %s226
      %s227 = sphi 0, %s224
      %s228 = sphi 0, %s227
      %s244 = sphi 0, %s228
    $region4: #{tpu_custom_call.1} parent=1 // loop_header_branch
      %23 = sbr.rel (%p21) target = $region8
    $region5: #{tpu_custom_call.1} parent=1 // loop_body
      %s25 = ssub.s32 %s20, 1
      %s26 = ssub.s32 %s20, 2
      %s27 = sadd.s32 %s20, 1
      %s28 = ssub.s32 %s20, %s27
      %p29 = scmp.eq.s32.totalorder %s28, 0
      %s31 = sadd.s32 %s30, 1
      %s32 = scalar_select %p29, %s30, %s31
      %p35 = pneg %p29
      %p36 = scmp.eq.s32.totalorder %s20, 1
      %p37 = por %p35, %p36
      %p38 = scmp.ne.s32.totalorder %s30, %s33
      %p39 = scmp.eq.s32.totalorder %s20, 0
      %p40 = por %p38, %p39
      %p41 = scmp.ne.s32.totalorder %s30, %s33
      %p42 = scmp.eq.s32.totalorder %s25, 1
      %p43 = por %p41, %p42
      %p44 = scmp.ne.s32.totalorder %s33, %s34
      %p45 = scmp.eq.s32.totalorder %s25, 0
      %p46 = por %p44, %p45
      %p47 = scmp.ne.s32.totalorder %s33, %s34
      %p48 = scmp.eq.s32.totalorder %s26, 1
      %p49 = por %p47, %p48
      %p51 = scmp.ne.s32.totalorder %s34, %s50
      %p52 = scmp.eq.s32.totalorder %s26, 0
      %p53 = por %p51, %p52
      %s55 = sadd.s32 %s54, 1
      %p58 = scmp.eq.s32.totalorder %s20, 1
      %p59 = scmp.ne.s32.totalorder %s54, %s56
      %p60 = scmp.eq.s32.totalorder %s20, 0
      %p61 = por %p59, %p60
      %p62 = scmp.ne.s32.totalorder %s54, %s56
      %p63 = scmp.eq.s32.totalorder %s25, 1
      %p64 = por %p62, %p63
      %p65 = scmp.ne.s32.totalorder %s56, %s57
      %p66 = scmp.eq.s32.totalorder %s25, 0
      %p67 = por %p65, %p66
      %p68 = scmp.ne.s32.totalorder %s56, %s57
      %p69 = scmp.eq.s32.totalorder %s26, 1
      %p70 = por %p68, %p69
      %p72 = scmp.ne.s32.totalorder %s57, %s71
      %p73 = scmp.eq.s32.totalorder %s26, 0
      %p74 = por %p72, %p73
      %s76 = sadd.s32 %s75, 1
      %p79 = scmp.eq.s32.totalorder %s20, 1
      %p80 = scmp.ne.s32.totalorder %s75, %s77
      %p81 = scmp.eq.s32.totalorder %s20, 0
      %p82 = por %p80, %p81
      %p83 = scmp.ne.s32.totalorder %s75, %s77
      %p84 = scmp.eq.s32.totalorder %s25, 1
      %p85 = por %p83, %p84
      %p86 = scmp.ne.s32.totalorder %s77, %s78
      %p87 = scmp.eq.s32.totalorder %s25, 0
      %p88 = por %p86, %p87
      %p89 = scmp.ne.s32.totalorder %s77, %s78
      %p90 = scmp.eq.s32.totalorder %s26, 1
      %p91 = por %p89, %p90
      %p93 = scmp.ne.s32.totalorder %s78, %s92
      %p94 = scmp.eq.s32.totalorder %s26, 0
      %p95 = por %p93, %p94
      %s97 = sadd.s32 %s96, 1
      %p100 = scmp.eq.s32.totalorder %s20, 1
      %p101 = scmp.ne.s32.totalorder %s96, %s98
      %p102 = scmp.eq.s32.totalorder %s20, 0
      %p103 = por %p101, %p102
      %p104 = scmp.ne.s32.totalorder %s96, %s98
      %p105 = scmp.eq.s32.totalorder %s25, 1
      %p106 = por %p104, %p105
      %p107 = scmp.ne.s32.totalorder %s98, %s99
      %p108 = scmp.eq.s32.totalorder %s25, 0
      %p109 = por %p107, %p108
      %p110 = scmp.ne.s32.totalorder %s98, %s99
      %p111 = scmp.eq.s32.totalorder %s26, 1
      %p112 = por %p110, %p111
      %p114 = scmp.ne.s32.totalorder %s99, %s113
      %p115 = scmp.eq.s32.totalorder %s26, 0
      %p116 = por %p114, %p115
      %s118 = sadd.s32 %s117, 1
      %p121 = scmp.eq.s32.totalorder %s20, 1
      %p122 = scmp.ne.s32.totalorder %s117, %s119
      %p123 = scmp.eq.s32.totalorder %s20, 0
      %p124 = por %p122, %p123
      %p125 = scmp.ne.s32.totalorder %s117, %s119
      %p126 = scmp.eq.s32.totalorder %s25, 1
      %p127 = por %p125, %p126
      %p128 = scmp.ne.s32.totalorder %s119, %s120
      %p129 = scmp.eq.s32.totalorder %s25, 0
      %p130 = por %p128, %p129
      %p131 = scmp.ne.s32.totalorder %s119, %s120
      %p132 = scmp.eq.s32.totalorder %s26, 1
      %p133 = por %p131, %p132
      %p135 = scmp.ne.s32.totalorder %s120, %s134
      %p136 = scmp.eq.s32.totalorder %s26, 0
      %p137 = por %p135, %p136
      %s139 = sadd.s32 %s138, 1
      %p142 = scmp.eq.s32.totalorder %s20, 1
      %p143 = scmp.ne.s32.totalorder %s138, %s140
      %p144 = scmp.eq.s32.totalorder %s20, 0
      %p145 = por %p143, %p144
      %p146 = scmp.ne.s32.totalorder %s138, %s140
      %p147 = scmp.eq.s32.totalorder %s25, 1
      %p148 = por %p146, %p147
      %p149 = scmp.ne.s32.totalorder %s140, %s141
      %p150 = scmp.eq.s32.totalorder %s25, 0
      %p151 = por %p149, %p150
      %p152 = scmp.ne.s32.totalorder %s140, %s141
      %p153 = scmp.eq.s32.totalorder %s26, 1
      %p154 = por %p152, %p153
      %p156 = scmp.ne.s32.totalorder %s141, %s155
      %p157 = scmp.eq.s32.totalorder %s26, 0
      %p158 = por %p156, %p157
      %s160 = sadd.s32 %s159, 1
      %p163 = scmp.eq.s32.totalorder %s20, 1
      %p164 = scmp.ne.s32.totalorder %s159, %s161
      %p165 = scmp.eq.s32.totalorder %s20, 0
      %p166 = por %p164, %p165
      %p167 = scmp.ne.s32.totalorder %s159, %s161
      %p168 = scmp.eq.s32.totalorder %s25, 1
      %p169 = por %p167, %p168
      %p170 = scmp.ne.s32.totalorder %s161, %s162
      %p171 = scmp.eq.s32.totalorder %s25, 0
      %p172 = por %p170, %p171
      %p173 = scmp.ne.s32.totalorder %s161, %s162
      %p174 = scmp.eq.s32.totalorder %s26, 1
      %p175 = por %p173, %p174
      %p177 = scmp.ne.s32.totalorder %s162, %s176
      %p178 = scmp.eq.s32.totalorder %s26, 0
      %p179 = por %p177, %p178
      %s181 = sadd.s32 %s180, 1
      %p184 = scmp.eq.s32.totalorder %s20, 1
      %p185 = scmp.ne.s32.totalorder %s180, %s182
      %p186 = scmp.eq.s32.totalorder %s20, 0
      %p187 = por %p185, %p186
      %p188 = scmp.ne.s32.totalorder %s180, %s182
      %p189 = scmp.eq.s32.totalorder %s25, 1
      %p190 = por %p188, %p189
      %p191 = scmp.ne.s32.totalorder %s182, %s183
      %p192 = scmp.eq.s32.totalorder %s25, 0
      %p193 = por %p191, %p192
      %p194 = scmp.ne.s32.totalorder %s182, %s183
      %p195 = scmp.eq.s32.totalorder %s26, 1
      %p196 = por %p194, %p195
      %p198 = scmp.ne.s32.totalorder %s183, %s197
      %p199 = scmp.eq.s32.totalorder %s26, 0
      %p200 = por %p198, %p199
      %s202 = sadd.s32 %s201, 1
      %p205 = scmp.eq.s32.totalorder %s20, 1
      %p206 = scmp.ne.s32.totalorder %s201, %s203
      %p207 = scmp.eq.s32.totalorder %s20, 0
      %p208 = por %p206, %p207
      %p209 = scmp.ne.s32.totalorder %s201, %s203
      %p210 = scmp.eq.s32.totalorder %s25, 1
      %p211 = por %p209, %p210
      %p212 = scmp.ne.s32.totalorder %s203, %s204
      %p213 = scmp.eq.s32.totalorder %s25, 0
      %p214 = por %p212, %p213
      %p215 = scmp.ne.s32.totalorder %s203, %s204
      %p216 = scmp.eq.s32.totalorder %s26, 1
      %p217 = por %p215, %p216
      %p219 = scmp.ne.s32.totalorder %s204, %s218
      %p220 = scmp.eq.s32.totalorder %s26, 0
      %p221 = por %p219, %p220
      %s222 = ssub.s32 %s20, %s27
      %p223 = scmp.eq.s32.totalorder %s222, 0
      %s225 = sadd.s32 %s224, 1
      %s226 = scalar_select %p223, %s224, %s225
      %p229 = pneg %p223
      %p230 = scmp.eq.s32.totalorder %s20, 1
      %p231 = por %p229, %p230
      %p232 = scmp.ne.s32.totalorder %s224, %s227
      %p233 = scmp.eq.s32.totalorder %s20, 0
      %p234 = por %p232, %p233
      %p235 = scmp.ne.s32.totalorder %s224, %s227
      %p236 = scmp.eq.s32.totalorder %s25, 1
      %p237 = por %p235, %p236
      %p238 = scmp.ne.s32.totalorder %s227, %s228
      %p239 = scmp.eq.s32.totalorder %s25, 0
      %p240 = por %p238, %p239
      %p241 = scmp.ne.s32.totalorder %s227, %s228
      %p242 = scmp.eq.s32.totalorder %s26, 1
      %p243 = por %p241, %p242
      %p245 = scmp.ne.s32.totalorder %s228, %s244
      %p246 = scmp.eq.s32.totalorder %s26, 0
      %p247 = por %p245, %p246
      %p248 = scmp.le.s32.totalorder 1, %s20
      %p249 = scmp.lt.s32.totalorder %s20, 3
      %p250 = pnand %p248, %p249
      %p251 = pneg %p250
      // Predicated region
      $region9: #{tpu_custom_call.1} parent=5 // pred_check
        _
      $region10: #{tpu_custom_call.1} parent=5 // pred_check_branch
        %253 = sbr.rel (%p250) target = $region12
      $region11: #{tpu_custom_call.1} parent=5 // pred_region
        %s254 = ssub.s32 %s20, 1
        // Predicated region
        $region13: #{tpu_custom_call.1} parent=11 // pred_check
          %p255 = pneg %p67
        $region14: #{tpu_custom_call.1} parent=11 // pred_check_branch
          %257 = sbr.rel (%p255) target = $region16
        $region15: #{tpu_custom_call.1} parent=11 // pred_region
          _
        $region16: #{tpu_custom_call.1} parent=11 // pred_fallthru
          _
        // Predicated region
        $region17: #{tpu_custom_call.1} parent=11 // pred_check
          %p258 = pneg %p88
        $region18: #{tpu_custom_call.1} parent=11 // pred_check_branch
          %260 = sbr.rel (%p258) target = $region20
        $region19: #{tpu_custom_call.1} parent=11 // pred_region
          %262 = vsyncadd [#allocation6], 0
          %s263 = sshll.u32 %s2, 4
          %s264 = int_to_ptr.hbm [resolvable:$true] %s263
          %s265 = sshll.u32 [#allocation5], 4
          %s266 = int_to_ptr.vmem [resolvable:$true] %s265
          %271 = dma.hbm_to_vmem [thread:$0]  %s264, 512, %s266, [#allocation6], 128, 128, 8
        $region20: #{tpu_custom_call.1} parent=11 // pred_fallthru
          _
        // Predicated region
        $region21: #{tpu_custom_call.1} parent=11 // pred_check
          %p272 = pneg %p109
        $region22: #{tpu_custom_call.1} parent=11 // pred_check_branch
          %274 = sbr.rel (%p272) target = $region24
        $region23: #{tpu_custom_call.1} parent=11 // pred_region
          _
        $region24: #{tpu_custom_call.1} parent=11 // pred_fallthru
          _
        // Predicated region
        $region25: #{tpu_custom_call.1} parent=11 // pred_check
          %p275 = pneg %p130
        $region26: #{tpu_custom_call.1} parent=11 // pred_check_branch
          %277 = sbr.rel (%p275) target = $region28
        $region27: #{tpu_custom_call.1} parent=11 // pred_region
          _
        $region28: #{tpu_custom_call.1} parent=11 // pred_fallthru
          _
        // Predicated region
        $region29: #{tpu_custom_call.1} parent=11 // pred_check
          %p278 = pneg %p151
        $region30: #{tpu_custom_call.1} parent=11 // pred_check_branch
          %280 = sbr.rel (%p278) target = $region32
        $region31: #{tpu_custom_call.1} parent=11 // pred_region
          %282 = vsyncadd [#allocation9], 0
          %s283 = sshll.u32 %s5, 4
          %s284 = int_to_ptr.hbm [resolvable:$true] %s283
          %s285 = sshll.u32 [#allocation8], 4
          %s286 = int_to_ptr.vmem [resolvable:$true] %s285
          %291 = dma.hbm_to_vmem [thread:$0]  %s284, 128, %s286, [#allocation9], 64, 64, 4
        $region32: #{tpu_custom_call.1} parent=11 // pred_fallthru
          _
        // Predicated region
        $region33: #{tpu_custom_call.1} parent=11 // pred_check
          %p292 = pneg %p172
        $region34: #{tpu_custom_call.1} parent=11 // pred_check_branch
          %294 = sbr.rel (%p292) target = $region36
        $region35: #{tpu_custom_call.1} parent=11 // pred_region
          _
        $region36: #{tpu_custom_call.1} parent=11 // pred_fallthru
          _
        // Predicated region
        $region37: #{tpu_custom_call.1} parent=11 // pred_check
          %p295 = pneg %p193
        $region38: #{tpu_custom_call.1} parent=11 // pred_check_branch
          %297 = sbr.rel (%p295) target = $region40
        $region39: #{tpu_custom_call.1} parent=11 // pred_region
          %299 = vsyncadd [#allocation9], 0
          %s300 = sshll.u32 %s7, 4
          %s301 = int_to_ptr.hbm [resolvable:$true] %s300
          %s302 = sshll.u32 [#allocation10], 4
          %s303 = int_to_ptr.vmem [resolvable:$true] %s302
          %308 = dma.hbm_to_vmem [thread:$0]  %s301, 256, %s303, [#allocation9], 64, 64, 4
        $region40: #{tpu_custom_call.1} parent=11 // pred_fallthru
          _
        // Predicated region
        $region41: #{tpu_custom_call.1} parent=11 // pred_check
          %p309 = pneg %p214
        $region42: #{tpu_custom_call.1} parent=11 // pred_check_branch
          %311 = sbr.rel (%p309) target = $region44
        $region43: #{tpu_custom_call.1} parent=11 // pred_region
          _
        $region44: #{tpu_custom_call.1} parent=11 // pred_fallthru
          _
      $region12: #{tpu_custom_call.1} parent=5 // pred_fallthru
        _
      %p312 = scmp.lt.s32.totalorder %s20, 2
      // Predicated region
      $region45: #{tpu_custom_call.1} parent=5 // pred_check
        %p313 = pneg %p312
      $region46: #{tpu_custom_call.1} parent=5 // pred_check_branch
        %315 = sbr.rel (%p313) target = $region48
      $region47: #{tpu_custom_call.1} parent=5 // pred_region
        // Predicated region
        $region49: #{tpu_custom_call.1} parent=47 // pred_check
          %p316 = pneg %p40
        $region50: #{tpu_custom_call.1} parent=47 // pred_check_branch
          %318 = sbr.rel (%p316) target = $region52
        $region51: #{tpu_custom_call.1} parent=47 // pred_region
          %s319 = smul.u32 2, %s20
          %p320 = scmp.lt.s32.totalorder %s319, 3
          %s321 = scalar_select %p320, %s319, 3
          %s322 = smul.addr %s321, 4
          %s323 = scalar_lea.vmem %s0, %s322
          %s324 = smul.u32 2, %s20
        $region52: #{tpu_custom_call.1} parent=47 // pred_fallthru
          _
      $region48: #{tpu_custom_call.1} parent=5 // pred_fallthru
        _
      %p325 = scmp.le.s32.totalorder 1, %s20
      %p326 = scmp.lt.s32.totalorder %s20, 3
      %p327 = pnand %p325, %p326
      %p328 = pneg %p327
      // Predicated region
      $region53: #{tpu_custom_call.1} parent=5 // pred_check
        _
      $region54: #{tpu_custom_call.1} parent=5 // pred_check_branch
        %330 = sbr.rel (%p327) target = $region56
      $region55: #{tpu_custom_call.1} parent=5 // pred_region
        %s331 = ssub.s32 %s20, 1
        // Predicated region
        $region57: #{tpu_custom_call.1} parent=55 // pred_check
          %p332 = pneg %p88
        $region58: #{tpu_custom_call.1} parent=55 // pred_check_branch
          %334 = sbr.rel (%p332) target = $region60
        $region59: #{tpu_custom_call.1} parent=55 // pred_region
          %336 = dma.done [#allocation6], 512
        $region60: #{tpu_custom_call.1} parent=55 // pred_fallthru
          _
        // Predicated region
        $region61: #{tpu_custom_call.1} parent=55 // pred_check
          %p337 = pneg %p151
        $region62: #{tpu_custom_call.1} parent=55 // pred_check_branch
          %339 = sbr.rel (%p337) target = $region64
        $region63: #{tpu_custom_call.1} parent=55 // pred_region
          %341 = dma.done [#allocation9], 128
        $region64: #{tpu_custom_call.1} parent=55 // pred_fallthru
          _
        // Predicated region
        $region65: #{tpu_custom_call.1} parent=55 // pred_check
          %p342 = pneg %p193
        $region66: #{tpu_custom_call.1} parent=55 // pred_check_branch
          %344 = sbr.rel (%p342) target = $region68
        $region67: #{tpu_custom_call.1} parent=55 // pred_region
          %346 = dma.done [#allocation9], 256
        $region68: #{tpu_custom_call.1} parent=55 // pred_fallthru
          _
        %s347 = smul.u32 2, %s25
        %p348 = scmp.lt.s32.totalorder %s347, 3
        %s349 = scalar_select %p348, %s347, 3
        %s350 = smul.addr %s349, 4
        %s351 = scalar_lea.vmem %s0, %s350
        %p352 = pneg %p46
        %p353 = pneg %p43
        %p354 = pneg %p67
        %p355 = pneg %p64
        %p356 = pneg %p88
        %p357 = pneg %p85
        %p358 = pneg %p109
        %p359 = pneg %p106
        %p360 = pneg %p130
        %p361 = pneg %p127
        %p362 = pneg %p151
        %p363 = pneg %p148
        %p364 = pneg %p172
        %p365 = pneg %p169
        %p366 = pneg %p193
        %p367 = pneg %p190
        %p368 = pneg %p214
        %p369 = pneg %p211
        %p370 = pneg %p240
        %p371 = pneg %p237
        %s372 = sand.u32 %s227, 1
        %s373 = scalar_lea.sflag [#allocation7], %s372
        %s374 = sand.u32 %s227, 1
        %s375 = smul.addr %s374, 8
        %s376 = scalar_lea.vmem [#allocation11], %s375
        %s377 = smul.u32 2, %s25
        %p378 = scmp.lt.s32.totalorder %s377, 3
        %s379 = scalar_select %p378, %s377, 3
        %s380 = smul.addr %s379, 4
        %s381 = scalar_lea.vmem %s0, %s380
        %s382 = smul.u32 2, %s25
        %v384 = vld [vmem:[%s381] sm:$0xf]
        %v385 = vld [vmem:[%s381 + $0x4] sm:$0xf]
        %v386 = vld [vmem:[%s3] sm:$0xf]
        %v387 = vld [vmem:[%s3 + $0x4] sm:$0xf]
        %v388 = vld [vmem:[%s4] sm:$0x1]
        %v390 = vperm.slane %v388, 0
        %v394 = vunpack.c.l.b16 %v384
        %v395 = vunpack.c.l.b16 %v385
        %v396 = vpack.c.b16 %v395, %v394
        %v399 = vunpack.c.l.b16 %v386
        %v400 = vunpack.c.l.b16 %v387
        %v401 = vpack.c.b16 %v400, %v399
        %vm403 = vcmask 130048
        %v405 = vsel %vm403, %v396, 0
        %407 = vmatpush.bf16.msra.mxu0 0
        %408 = vmatpush.bf16.msra.mxu0 0
        %409 = vmatpush.bf16.msra.mxu0 0
        %410 = vmatpush.bf16.msra.mxu0 0
        %411 = vmatpush.bf16.msra.mxu0 0
        %412 = vmatpush.bf16.msra.mxu0 0
        %413 = vmatpush.bf16.msra.mxu0 0
        %414 = vmatpush.bf16.msra.mxu0 %v401
        %415 = vmatmul.bf16.gmra.mxu0 %v405
        %v416 = vpop.f32.mrf.mxu0
        %v417 = vadd.f32 %v390, %v416
        %v418 = vpop.f32.mrf.mxu0
        %v419 = vadd.f32 %v390, %v418
        %420 = vdwg.mxu0
        %v421 = vld [vmem:[#allocation8] sm:$0xf]
        %v422 = vld [vmem:[#allocation8 + $0x4] sm:$0xf]
        %v423 = vld [vmem:[%s6] sm:$0x1]
        %v425 = vperm.slane %v423, 0
        %v429 = vunpack.c.l.b16 %v421
        %v430 = vunpack.c.l.b16 %v422
        %v431 = vpack.c.b16 %v430, %v429
        %433 = vmatpush.bf16.msra.mxu0 0
        %434 = vmatpush.bf16.msra.mxu0 0
        %435 = vmatpush.bf16.msra.mxu0 0
        %436 = vmatpush.bf16.msra.mxu0 0
        %437 = vmatpush.bf16.msra.mxu0 0
        %438 = vmatpush.bf16.msra.mxu0 0
        %439 = vmatpush.bf16.msra.mxu0 0
        %440 = vmatpush.bf16.msra.mxu0 %v431
        %441 = vmatmul.bf16.gmra.mxu0 %v405
        %v442 = vpop.f32.mrf.mxu0
        %v443 = vadd.f32 %v425, %v442
        %v444 = vpop.f32.mrf.mxu0
        %v445 = vadd.f32 %v425, %v444
        %446 = vdwg.mxu0
        %v447 = vpack.c.bf16 %v417, %v417
        %v448 = vpack.c.bf16 %v419, %v419
        %vm449 = vcmask 257024
        %450 = vst.msk [vmem:[#allocation2] sm:$0xf] %vm449, %v447
        %451 = vst.msk [vmem:[#allocation2 + $0x4] sm:$0xf] %vm449, %v448
        %v452 = vpack.c.bf16 %v443, %v443
        %v453 = vpack.c.bf16 %v445, %v445
        %454 = vst.msk [vmem:[#allocation3] sm:$0xf] %vm449, %v452
        %455 = vst.msk [vmem:[#allocation3 + $0x4] sm:$0xf] %vm449, %v453
        %v456 = vld [vmem:[%s1] sm:$0xf]
        %v457 = vld [vmem:[%s1 + $0x4] sm:$0xf]
        %v458 = vld [vmem:[%s1 + $0x8] sm:$0xf]
        %v459 = vld [vmem:[%s1 + $0xc] sm:$0xf]
        %v460 = vld [vmem:[#allocation5] sm:$0xff]
        %v461 = vld [vmem:[#allocation5 + $0x8] sm:$0xff]
        %v462 = vld [vmem:[#allocation5 + $0x10] sm:$0xff]
        %v463 = vld [vmem:[#allocation5 + $0x18] sm:$0xff]
        %v464 = vld [vmem:[#allocation2] sm:$0xf]
        %v465 = vld [vmem:[#allocation2 + $0x4] sm:$0xf]
        %v466 = vld [vmem:[#allocation3] sm:$0xf]
        %v467 = vld [vmem:[#allocation3 + $0x4] sm:$0xf]
        %v472 = vunpack.c.l.b16 %v456
        %v473 = vunpack.c.l.b16 %v457
        %v474 = vunpack.c.l.b16 %v458
        %v475 = vunpack.c.l.b16 %v459
        %v476 = vpack.c.b16 %v473, %v472
        %v477 = vpack.c.b16 %v475, %v474
        %v480 = vunpack.c.l.b16 %v464
        %v481 = vunpack.c.l.b16 %v465
        %v482 = vpack.c.b16 %v481, %v480
        %vm483 = vcmask 261120
        %v485 = vsel %vm483, %v476, 0
        %v488 = vsel %vm483, %v477, 0
        %v491 = vsel %vm483, %v482, 0
        %493 = vmatpush.bf16.xpose.msra.mxu0 0
        %494 = vmatpush.bf16.xpose.msra.mxu0 0
        %495 = vmatpush.bf16.xpose.msra.mxu0 0
        %496 = vmatpush.bf16.xpose.msra.mxu0 0
        %497 = vmatpush.bf16.xpose.msra.mxu0 0
        %498 = vmatpush.bf16.xpose.msra.mxu0 0
        %499 = vmatpush.bf16.xpose.msra.mxu0 0
        %500 = vmatpush.bf16.xpose.msra.mxu0 %v491
        %501 = vmatmul.bf16.gmra.mxu0 %v485
        %v502 = vpop.f32.mrf.mxu0
        %v503 = vadd.f32 0.0, %v502
        %v504 = vpop.f32.mrf.mxu0
        %v505 = vadd.f32 0.0, %v504
        %506 = vmatmul.bf16.gmra.mxu0 %v488
        %v507 = vpop.f32.mrf.mxu0
        %v508 = vadd.f32 0.0, %v507
        %v509 = vpop.f32.mrf.mxu0
        %v510 = vadd.f32 0.0, %v509
        %511 = vdwg.mxu0
        %v512 = vsel %vm403, %v503, -inf
        %513 = vmax.xlane.f32.xlu0 %v512
        %v514 = vpop.xlane.xlu0 %513
        %v515 = vsel %vm403, %v505, -inf
        %516 = vmax.xlane.f32.xlu0 %v515
        %v517 = vpop.xlane.xlu0 %516
        %v518 = vsel %vm403, %v508, -inf
        %519 = vmax.xlane.f32.xlu0 %v518
        %v520 = vpop.xlane.xlu0 %519
        %v521 = vsel %vm403, %v510, -inf
        %522 = vmax.xlane.f32.xlu0 %v521
        %v523 = vpop.xlane.xlu0 %522
        %v524 = vsub.f32 %v503, %v514
        %v525 = vsub.f32 %v505, %v517
        %v526 = vsub.f32 %v508, %v520
        %v527 = vsub.f32 %v510, %v523
        %v528 = vmul.f32 %v524, 1.442695
        %v529 = vpow.pop %v528
        %v530 = vmul.f32 %v525, 1.442695
        %v531 = vpow.pop %v530
        %v532 = vmul.f32 %v526, 1.442695
        %v533 = vpow.pop %v532
        %v534 = vmul.f32 %v527, 1.442695
        %v535 = vpow.pop %v534
        %v536 = vsel %vm403, %v529, 0.0
        %537 = vadd.xlane.f32.xlu0 %v536
        %v538 = vpop.xlane.xlu0 %537
        %v539 = vsel %vm403, %v531, 0.0
        %540 = vadd.xlane.f32.xlu0 %v539
        %v541 = vpop.xlane.xlu0 %540
        %v542 = vsel %vm403, %v533, 0.0
        %543 = vadd.xlane.f32.xlu0 %v542
        %v544 = vpop.xlane.xlu0 %543
        %v545 = vsel %vm403, %v535, 0.0
        %546 = vadd.xlane.f32.xlu0 %v545
        %v547 = vpop.xlane.xlu0 %546
        %v548 = vrcp.pop %v538
        %v549 = vrcp.pop %v541
        %v550 = vrcp.pop %v544
        %v551 = vrcp.pop %v547
        %v552 = vmul.f32 %v529, %v548
        %v553 = vmul.f32 %v531, %v549
        %v554 = vmul.f32 %v533, %v550
        %v555 = vmul.f32 %v535, %v551
        %v556 = vpack.c.bf16 %v553, %v552
        %v557 = vpack.c.bf16 %v555, %v554
        %v560 = vunpack.c.l.b16 %v466
        %v561 = vunpack.c.l.b16 %v467
        %v562 = vpack.c.b16 %v561, %v560
        %v565 = vsel %vm403, %v556, 0
        %v568 = vsel %vm403, %v557, 0
        %570 = vmatpush.bf16.msra.mxu0 0
        %571 = vmatpush.bf16.msra.mxu0 0
        %572 = vmatpush.bf16.msra.mxu0 0
        %573 = vmatpush.bf16.msra.mxu0 0
        %574 = vmatpush.bf16.msra.mxu0 0
        %575 = vmatpush.bf16.msra.mxu0 0
        %576 = vmatpush.bf16.msra.mxu0 0
        %577 = vmatpush.bf16.msra.mxu0 %v562
        %578 = vmatmul.bf16.gmra.mxu0 %v565
        %v579 = vpop.f32.mrf.mxu0
        %v580 = vadd.f32 0.0, %v579
        %v581 = vpop.f32.mrf.mxu0
        %v582 = vadd.f32 0.0, %v581
        %583 = vmatmul.bf16.gmra.mxu0 %v568
        %v584 = vpop.f32.mrf.mxu0
        %v585 = vadd.f32 0.0, %v584
        %v586 = vpop.f32.mrf.mxu0
        %v587 = vadd.f32 0.0, %v586
        %588 = vdwg.mxu0
        %v589 = vmul.f32 %v580, %v460
        %v590 = vmul.f32 %v582, %v461
        %v591 = vmul.f32 %v585, %v462
        %v592 = vmul.f32 %v587, %v463
        %v593 = vadd.f32 %v589, %v590
        %v594 = vadd.f32 %v593, %v591
        %v595 = vadd.f32 %v594, %v592
        %596 = vst.msk [vmem:[#allocation4] sm:$0xff] %vm483, %v595
        %v597 = vld [vmem:[#allocation4] sm:$0xff]
        %v598 = vpack.c.bf16 %v597, %v597
        %v599 = vld [vmem:[#allocation10] sm:$0xf]
        %v600 = vld [vmem:[#allocation10 + $0x4] sm:$0xf]
        %v601 = vld [vmem:[#allocation10 + $0x8] sm:$0xf]
        %v602 = vld [vmem:[#allocation10 + $0xc] sm:$0xf]
        %v603 = vld [vmem:[%s8] sm:$0x1]
        %v605 = vperm.slane %v603, 0
        %v611 = vunpack.c.l.b16 %v599
        %v612 = vunpack.c.l.b16 %v600
        %v613 = vunpack.c.l.b16 %v601
        %v614 = vunpack.c.l.b16 %v602
        %v615 = vpack.c.b16 %v612, %v611
        %v616 = vpack.c.b16 %v614, %v613
        %v620 = vsel %vm483, %v598, 0
        %622 = vmatpush.bf16.msra.mxu0 0
        %623 = vmatpush.bf16.msra.mxu0 0
        %624 = vmatpush.bf16.msra.mxu0 0
        %625 = vmatpush.bf16.msra.mxu0 0
        %626 = vmatpush.bf16.msra.mxu0 0
        %627 = vmatpush.bf16.msra.mxu0 0
        %628 = vmatpush.bf16.msra.mxu0 %v616
        %629 = vmatpush.bf16.msra.mxu0 %v615
        %630 = vmatmul.bf16.gmra.mxu0 %v620
        %v631 = vpop.f32.mrf.mxu0
        %v632 = vadd.f32 %v605, %v631
        %v633 = vpop.f32.mrf.mxu0
        %634 = vdwg.mxu0
        %635 = vst [vmem:[%s376] sm:$0xff] %v632
        %s636 = sand.u32 %s227, 1
        %s637 = scalar_lea.sflag [#allocation7], %s636
        %s638 = sand.u32 %s227, 1
        %s639 = smul.addr %s638, 8
        %s640 = scalar_lea.vmem [#allocation11], %s639
        // Predicated region
        $region69: #{tpu_custom_call.1} parent=55 // pred_check
          %p641 = pneg %p237
        $region70: #{tpu_custom_call.1} parent=55 // pred_check_branch
          %643 = sbr.rel (%p641) target = $region72
        $region71: #{tpu_custom_call.1} parent=55 // pred_region
          %645 = vsyncadd %s637, 0
          %s646 = smul.addr %s25, 8
          %s647 = scalar_lea.hbm %s9, %s646
          %s649 = sshll.u32 %s640, 4
          %s650 = int_to_ptr.vmem [resolvable:$true] %s649
          %s651 = sshll.u32 %s647, 4
          %s652 = int_to_ptr.hbm [resolvable:$true] %s651
          %654 = dma.vmem_to_hbm [thread:$0]  %s650, 128, %s652, %s637
        $region72: #{tpu_custom_call.1} parent=55 // pred_fallthru
          _
      $region56: #{tpu_custom_call.1} parent=5 // pred_fallthru
        _
      %p655 = scmp.le.s32.totalorder 2, %s20
      // Predicated region
      $region73: #{tpu_custom_call.1} parent=5 // pred_check
        %p656 = pneg %p655
      $region74: #{tpu_custom_call.1} parent=5 // pred_check_branch
        %658 = sbr.rel (%p656) target = $region76
      $region75: #{tpu_custom_call.1} parent=5 // pred_region
        %s659 = ssub.s32 %s20, 2
        // Predicated region
        $region77: #{tpu_custom_call.1} parent=75 // pred_check
          %p660 = pneg %p243
        $region78: #{tpu_custom_call.1} parent=75 // pred_check_branch
          %662 = sbr.rel (%p660) target = $region80
        $region79: #{tpu_custom_call.1} parent=75 // pred_region
          %s663 = sand.u32 %s228, 1
          %s664 = scalar_lea.sflag [#allocation7], %s663
          %s665 = sand.u32 %s228, 1
          %s666 = smul.addr %s665, 8
          %s667 = scalar_lea.vmem [#allocation11], %s666
          %669 = dma.done %s664, 128
        $region80: #{tpu_custom_call.1} parent=75 // pred_fallthru
          _
      $region76: #{tpu_custom_call.1} parent=5 // pred_fallthru
        _
    $region6: #{tpu_custom_call.1} parent=1 // loop_footer
      %s24 = sadd.s32 1, %s20
    $region7: #{tpu_custom_call.1} parent=1 // loop_footer_branch
      %19 = sbr.rel target = $region3
    $region8: #{tpu_custom_call.1} parent=1 // loop_exit
      _
    %670 = vsyncpa [#allocation6], 1
    %s671 = scalar_lea.sflag [#allocation6], 1
    %672 = vsyncpa %s671, 1
    %673 = vsyncpa [#allocation9], 1
    %674 = vsyncpa [#allocation7], 1
    %s675 = scalar_lea.sflag [#allocation7], 1
    %676 = vsyncpa %s675, 1

</llo_original>
